<compile_context>
chip_gen: v7x
topology: tpu7x:2x2x1
jax: 0.10.0
libtpu: 0.0.40
codegen_flags: <defaults>
</compile_context>

<pallas_src>
import functools

import jax
import jax.numpy as jnp
from jax import lax
from jax.experimental import pallas as pl
from jax.experimental.pallas import tpu as pltpu

# VMEM budget: safe on v5e/v6e (128 MiB) and leaves headroom on v7x (64 MiB).
# TODO(synk): for S >~ 512 on v7x, tile the KV axis (online softmax + running
# right-to-left gate sum) so the per-step (S, S) temporaries stay bounded.
_VMEM_LIMIT = 48 * 1024 * 1024


def _pick_tile(dim, candidates):
    """Largest candidate tile that evenly divides dim, else the full dim."""
    for c in candidates:
        if dim >= c and dim % c == 0:
            return c
    return dim


# ----------------------------------------------------------------------------
# Tiled linear:  Y = X @ W + b  (optional ReLU)
# ----------------------------------------------------------------------------
def _linear_kernel(x_ref, w_ref, b_ref, o_ref, acc_ref, *, relu):
    @pl.when(pl.program_id(2) == 0)
    def _():
        acc_ref[...] = jnp.zeros_like(acc_ref)

    acc_ref[...] += jnp.dot(x_ref[...], w_ref[...],
                            preferred_element_type=jnp.float32)

    @pl.when(pl.program_id(2) == pl.num_programs(2) - 1)
    def _():
        y = acc_ref[...] + b_ref[...]
        if relu:
            y = jnp.maximum(y, 0.0)
        o_ref[...] = y.astype(o_ref.dtype)


def pallas_linear(x, w, b, relu=False, out_dtype=jnp.bfloat16,
                  tm_candidates=(512, 256, 128, 64, 32, 16, 8)):
    """x: (M, K) bf16, w: (K, N) bf16, b: (N,) f32 -> (M, N)."""
    M, K = x.shape
    N = w.shape[1]
    # Large, non-lane-aligned N (e.g. vocab sizes like 50257) is padded to a
    # multiple of 128 so it can be tiled instead of falling back to a single
    # huge (tk, N) weight block that would blow the VMEM budget.
    if N > 128 and N % 128 != 0:
        n_pad = ((N + 127) // 128) * 128
        w = jnp.pad(w, ((0, 0), (0, n_pad - N)))
        b = jnp.pad(b, (0, n_pad - N))
    else:
        n_pad = N
    tm = _pick_tile(M, tm_candidates)
    tk = _pick_tile(K, (512, 256, 128))
    tn = _pick_tile(n_pad, (512, 256, 128))
    b2 = b.reshape(1, n_pad).astype(jnp.float32)
    out = pl.pallas_call(
        functools.partial(_linear_kernel, relu=relu),
        out_shape=jax.ShapeDtypeStruct((M, n_pad), out_dtype),
        grid_spec=pltpu.PrefetchScalarGridSpec(
            num_scalar_prefetch=0,
            grid=(M // tm, n_pad // tn, K // tk),
            in_specs=[
                pl.BlockSpec((tm, tk), lambda i, j, k: (i, k)),
                pl.BlockSpec((tk, tn), lambda i, j, k: (k, j)),
                pl.BlockSpec((1, tn), lambda i, j, k: (0, j)),
            ],
            out_specs=pl.BlockSpec((tm, tn), lambda i, j, k: (i, j)),
            scratch_shapes=[pltpu.VMEM((tm, tn), jnp.float32)]),
        compiler_params=pltpu.CompilerParams(
            dimension_semantics=("parallel", "parallel", "arbitrary"),
            vmem_limit_bytes=_VMEM_LIMIT),
    )(x, w, b2)
    return out if n_pad == N else out[:, :N]


# ----------------------------------------------------------------------------
# Tiled linear fused with AddNorm epilogue:  LayerNorm(residual + X @ W + b)
# (LayerNorm reduces over the feature dim, so N is kept as a single tile.)
# ----------------------------------------------------------------------------
def _linear_addnorm_kernel(x_ref, w_ref, b_ref, res_ref, g_ref, bt_ref,
                           o_ref, acc_ref):
    @pl.when(pl.program_id(1) == 0)
    def _():
        acc_ref[...] = jnp.zeros_like(acc_ref)

    acc_ref[...] += jnp.dot(x_ref[...], w_ref[...],
                            preferred_element_type=jnp.float32)

    @pl.when(pl.program_id(1) == pl.num_programs(1) - 1)
    def _():
        s = acc_ref[...] + b_ref[...] + res_ref[...].astype(jnp.float32)
        mean = jnp.mean(s, axis=-1, keepdims=True)
        var = jnp.mean((s - mean) ** 2, axis=-1, keepdims=True)
        n = (s - mean) * lax.rsqrt(var + 1e-5)
        o_ref[...] = (n * g_ref[...] + bt_ref[...]).astype(o_ref.dtype)


def pallas_linear_addnorm(x, w, b, residual, gamma, beta,
                          out_dtype=jnp.bfloat16):
    """LayerNorm(residual + x @ w + b) over the last dim."""
    M, K = x.shape
    N = w.shape[1]
    tm = _pick_tile(M, (512, 256, 128, 64, 32, 16, 8))
    tk = _pick_tile(K, (512, 256, 128))
    b2 = b.reshape(1, N).astype(jnp.float32)
    g2 = gamma.reshape(1, N).astype(jnp.float32)
    bt2 = beta.reshape(1, N).astype(jnp.float32)
    return pl.pallas_call(
        _linear_addnorm_kernel,
        out_shape=jax.ShapeDtypeStruct((M, N), out_dtype),
        grid_spec=pltpu.PrefetchScalarGridSpec(
            num_scalar_prefetch=0,
            grid=(M // tm, K // tk),
            in_specs=[
                pl.BlockSpec((tm, tk), lambda i, k: (i, k)),
                pl.BlockSpec((tk, N), lambda i, k: (k, 0)),
                pl.BlockSpec((1, N), lambda i, k: (0, 0)),
                pl.BlockSpec((tm, N), lambda i, k: (i, 0)),
                pl.BlockSpec((1, N), lambda i, k: (0, 0)),
                pl.BlockSpec((1, N), lambda i, k: (0, 0)),
            ],
            out_specs=pl.BlockSpec((tm, N), lambda i, k: (i, 0)),
            scratch_shapes=[pltpu.VMEM((tm, N), jnp.float32)]),
        compiler_params=pltpu.CompilerParams(
            dimension_semantics=("parallel", "arbitrary"),
            vmem_limit_bytes=_VMEM_LIMIT),
    )(x, w, b2, residual, g2, bt2)


# ----------------------------------------------------------------------------
# Fused CoPE multi-head attention.
# ----------------------------------------------------------------------------
def _build_mask_and_tri(vlen, S):
    row = lax.broadcasted_iota(jnp.int32, (S, S), 0)
    col = lax.broadcasted_iota(jnp.int32, (S, S), 1)
    # Causal + valid-length mask built in-kernel from scalar-prefetched valid_len.
    bias = jnp.where((col <= row) & (col < vlen), 0.0, -1e9).astype(jnp.float32)
    # U[j', j] = 1 iff j' >= j  ->  gates @ U = reverse cumsum of gates.
    rev_tri = (row >= col).astype(jnp.bfloat16)
    return bias, rev_tri


def _cope_head(q, k, v, pe, bias, rev_tri, scale, npos):
    """Per-head CoPE attention on loaded bf16 tiles; returns f32 (S, dh)."""
    S = q.shape[0]
    # One fused MXU push produces both QK^T scores and the integer-position
    # logits q @ pe^T (pe stored (P, dh)); contracting dh on both operands
    # avoids an XLU transpose of K and a tiny heavily-padded (dh, P) matmul.
    rhs = jnp.concatenate([k, pe], axis=0)                       # (S + P, dh)
    sk = lax.dot_general(q, rhs, (((1,), (1,)), ((), ())),
                         preferred_element_type=jnp.float32)     # (S, S + P)
    scores = sk[:, :S] * scale + bias
    logits_int = sk[:, S:]                                       # (S, P)

    # CoPE contextual positions: reverse cumsum of sigmoid gates (MXU matmul;
    # masked logits give sigmoid(-1e9) = 0 so padded keys contribute nothing).
    # TODO(synk): on v5e this S^3 matmul can dominate at long S; a flip+cumsum
    # (or KV-tiled running gate sum) is preferable there.
    gates = jax.nn.sigmoid(scores)
    pos = jnp.dot(gates.astype(jnp.bfloat16), rev_tri,
                  preferred_element_type=jnp.float32)
    pos = jnp.minimum(pos, float(npos - 1))      # pos >= 0 (sum of sigmoids)

    # Linear interpolation of integer-position logits, accumulated one
    # position at a time -> no (S, S, P) intermediates.  The weight can never
    # exceed 1, so only the lower clamp is needed.
    cope = jnp.zeros_like(scores)
    for p in range(npos):
        wgt = jnp.maximum(1.0 - jnp.abs(pos - float(p)), 0.0)
        cope = cope + logits_int[:, p:p + 1] * wgt

    # softmax(scores + cope) @ V
    logits = scores + cope
    m = jnp.max(logits, axis=-1, keepdims=True)
    e = jnp.exp(logits - m)
    attn = e * pl.reciprocal(jnp.sum(e, axis=-1, keepdims=True), approx=True)
    return jnp.dot(attn.astype(jnp.bfloat16), v,
                   preferred_element_type=jnp.float32)


def _cope_attn_kernel_headgrid(vlen_ref, q_ref, k_ref, v_ref, pe_ref, o_ref,
                               *, hpb, dh, scale):
    """Grid = (batch, head_group); refs are (S, hpb*dh) column slices of QKV."""
    S = q_ref.shape[0]
    P = pe_ref.shape[0]
    bias, rev_tri = _build_mask_and_tri(vlen_ref[pl.program_id(0)], S)
    pe = pe_ref[...].astype(jnp.bfloat16)
    for i in range(hpb):
        lo, hi = i * dh, (i + 1) * dh            # static ref slices -> plain loads
        out_h = _cope_head(q_ref[:, lo:hi], k_ref[:, lo:hi], v_ref[:, lo:hi],
                           pe, bias, rev_tri, scale, P)
        o_ref[:, lo:hi] = out_h.astype(o_ref.dtype)   # per-head store, frees out_h


def _cope_attn_kernel_fallback(vlen_ref, qkv_ref, pe_ref, o_ref,
                               *, nheads, dh, scale):
    """Tiny-model path: one (S, 3D) block per batch; heads are ref-sliced."""
    S, D = o_ref.shape
    P = pe_ref.shape[0]
    bias, rev_tri = _build_mask_and_tri(vlen_ref[pl.program_id(0)], S)
    pe = pe_ref[...].astype(jnp.bfloat16)
    for h in range(nheads):
        lo, hi = h * dh, (h + 1) * dh
        q = qkv_ref[:, lo:hi]
        k = qkv_ref[:, D + lo:D + hi]
        v = qkv_ref[:, 2 * D + lo:2 * D + hi]
        out_h = _cope_head(q, k, v, pe, bias, rev_tri, scale, P)
        o_ref[:, lo:hi] = out_h.astype(o_ref.dtype)


def _heads_per_block(nheads, dh):
    """Smallest head count per grid step whose lane width is a multiple of 128."""
    for c in range(1, nheads + 1):
        if nheads % c == 0 and (c * dh) % 128 == 0:
            return c
    return None


def pallas_cope_attention(qkv, pos_emb, valid_len, nheads, seq_len):
    """qkv: (B*S, 3D) bf16, pos_emb: (P, dh), valid_len: (B,) i32 -> (B*S, D) bf16."""
    BS, three_d = qkv.shape
    D = three_d // 3
    dh = D // nheads
    P = pos_emb.shape[0]
    S = seq_len
    B = BS // S
    scale = 1.0 / float(dh) ** 0.5
    pos_emb = pos_emb.astype(jnp.bfloat16)

    hpb = _heads_per_block(nheads, dh)
    if hpb is not None:
        # Heads on the grid: lane-dense per-step blocks, nheads-x smaller
        # live (S, S) temporaries, and B * n_groups megacore-parallel steps.
        ng = nheads // hpb
        hd = hpb * dh
        return pl.pallas_call(
            functools.partial(_cope_attn_kernel_headgrid,
                              hpb=hpb, dh=dh, scale=scale),
            out_shape=jax.ShapeDtypeStruct((BS, D), jnp.bfloat16),
            grid_spec=pltpu.PrefetchScalarGridSpec(
                num_scalar_prefetch=1,                  # valid_len -> SMEM
                grid=(B, ng),
                in_specs=[
                    pl.BlockSpec((S, hd), lambda b, g, vl: (b, g)),            # Q
                    pl.BlockSpec((S, hd), lambda b, g, vl: (b, ng + g)),       # K
                    pl.BlockSpec((S, hd), lambda b, g, vl: (b, 2 * ng + g)),   # V
                    pl.BlockSpec((P, dh), lambda b, g, vl: (0, 0)),            # CoPE emb
                ],
                out_specs=pl.BlockSpec((S, hd), lambda b, g, vl: (b, g))),
            compiler_params=pltpu.CompilerParams(
                dimension_semantics=("parallel", "parallel"),
                vmem_limit_bytes=_VMEM_LIMIT),
        )(valid_len, qkv, qkv, qkv, pos_emb)

    # Fallback for head widths that cannot be lane-aligned (tiny test models).
    return pl.pallas_call(
        functools.partial(_cope_attn_kernel_fallback,
                          nheads=nheads, dh=dh, scale=scale),
        out_shape=jax.ShapeDtypeStruct((BS, D), jnp.bfloat16),
        grid_spec=pltpu.PrefetchScalarGridSpec(
            num_scalar_prefetch=1,
            grid=(B,),
            in_specs=[
                pl.BlockSpec((S, 3 * D), lambda b, vl: (b, 0)),
                pl.BlockSpec((P, dh), lambda b, vl: (0, 0)),
            ],
            out_specs=pl.BlockSpec((S, D), lambda b, vl: (b, 0))),
        compiler_params=pltpu.CompilerParams(
            dimension_semantics=("parallel",),
            vmem_limit_bytes=_VMEM_LIMIT),
    )(valid_len, qkv, pos_emb)


# ----------------------------------------------------------------------------
# Model glue (parameter setup, embedding lookup)
# ----------------------------------------------------------------------------
def init_params(key, nlayers, idims, hdims, nheads, npos_max, vocab_size):
    dh = idims // nheads
    keys = jax.random.split(key, 3 + nlayers)

    def w(k, shape):  # bf16 weights for MXU; biases / LN params stay f32
        return (jax.random.normal(k, shape, jnp.float32) * 0.02).astype(jnp.bfloat16)

    params = {
        "tok_emb": w(keys[0], (vocab_size, idims)),
        "fc_w": w(keys[1], (idims, vocab_size)),
        "fc_b": jnp.zeros((vocab_size,), jnp.float32),
        "layers": [],
    }
    for l in range(nlayers):
        lk = jax.random.split(keys[3 + l], 8)
        layer = {
            # fused Q/K/V projection weight: (D, 3D)
            "w_qkv": jnp.concatenate([w(lk[0], (idims, idims)),
                                      w(lk[1], (idims, idims)),
                                      w(lk[2], (idims, idims))], axis=1),
            "b_qkv": jnp.zeros((3 * idims,), jnp.float32),
            "wo": w(lk[3], (idims, idims)),
            "bo": jnp.zeros((idims,), jnp.float32),
            # CoPE position embedding, shared across heads: (npos_max, head_dim)
            "pos_emb": w(lk[4], (npos_max, dh)),
            "ln1_g": jnp.ones((idims,), jnp.float32),
            "ln1_b": jnp.zeros((idims,), jnp.float32),
            "w1": w(lk[5], (idims, hdims)),
            "b1": jnp.zeros((hdims,), jnp.float32),
            "w2": w(lk[6], (hdims, idims)),
            "b2": jnp.zeros((idims,), jnp.float32),
            "ln2_g": jnp.ones((idims,), jnp.float32),
            "ln2_b": jnp.zeros((idims,), jnp.float32),
        }
        params["layers"].append(layer)
    return params


def copeformer_layer_forward(x_flat, valid_len, p, nheads, seq_len):
    """x_flat: (B*S, D) bf16 -> (B*S, D) bf16."""
    # TODO(synk): fusing the QKV projection into the attention kernel (K-loop
    # emit_pipeline inside the body) would avoid re-reading the (B*S, 3D)
    # activation from HBM; kept separate here for clarity.
    qkv = pallas_linear(x_flat, p["w_qkv"], p["b_qkv"])                 # (B*S, 3D)
    attn = pallas_cope_attention(qkv, p["pos_emb"], valid_len, nheads, seq_len)
    # Wo projection fused with residual-add + LayerNorm (AddNorm around attention)
    x1 = pallas_linear_addnorm(attn, p["wo"], p["bo"], x_flat,
                               p["ln1_g"], p["ln1_b"])
    # Position-wise FFN; second matmul fused with its AddNorm
    h = pallas_linear(x1, p["w1"], p["b1"], relu=True)
    x2 = pallas_linear_addnorm(h, p["w2"], p["b2"], x1,
                               p["ln2_g"], p["ln2_b"])
    return x2


def copeformer_forward(tokens, params, nheads, valid_len=None):
    # TODO(synk): the reference unpacks `bs, seq_len, _ = x.shape` then embeds the
    # index tensor, and calls the *class* AddNorm on x; both are inconsistent in
    # the original code — we take (B, S) token ids and skip the spurious norm call.
    B, S = tokens.shape
    x = params["tok_emb"][tokens]              # (B, S, D) embedding lookup (XLA glue)
    if valid_len is None:
        valid_len = jnp.full((B,), S, dtype=jnp.int32)
    x_flat = x.reshape(B * S, -1)
    for lp in params["layers"]:
        x_flat = copeformer_layer_forward(x_flat, valid_len, lp, nheads, S)
    # Vocab projection: large tm cuts HBM re-reads of the (D, vocab) weight.
    out = pallas_linear(x_flat, params["fc_w"], params["fc_b"],
                        out_dtype=jnp.float32,
                        tm_candidates=(2048, 1024, 512, 256, 128, 64, 32, 16, 8))
    return out.reshape(B, S, -1)


# ----------------------------------------------------------------------------
if __name__ == "__main__":
    nlayers = 2
    idims = 32
    hdims = 64
    nheads = 4
    npos_max = 8
    vocab_size = 50
    B, S = 2, 8

    key = jax.random.PRNGKey(0)
    pkey, tkey = jax.random.split(key)
    params = init_params(pkey, nlayers, idims, hdims, nheads, npos_max, vocab_size)
    tokens = jax.random.randint(tkey, (B, S), 0, vocab_size, dtype=jnp.int32)

    out = copeformer_forward(tokens, params, nheads)
    out = jax.block_until_ready(out)
    assert out.shape == (B, S, vocab_size)
    assert bool(jnp.all(jnp.isfinite(out)))
    print("KERNEL_OK")
</pallas_src>

<mosaic_0001>
module attributes {stable_mosaic.version = 11 : i64} {
  func.func @_linear_kernel(%arg0: i32, %arg1: i32, %arg2: i32, %arg3: memref<16x32xbf16, #tpu.memory_space<vmem>>, %arg4: memref<32x96xbf16, #tpu.memory_space<vmem>>, %arg5: memref<1x96xf32, #tpu.memory_space<vmem>>, %arg6: memref<16x96xbf16, #tpu.memory_space<vmem>>, %arg7: memref<16x96xf32, #tpu.memory_space<vmem>>) attributes {dimension_semantics = [#tpu.dimension_semantics<parallel>, #tpu.dimension_semantics<parallel>, #tpu.dimension_semantics<arbitrary>], iteration_bounds = array<i64: 1, 1, 1>, scalar_prefetch = 0 : i64, scratch_operands = 1 : i64, tpu.core_type = #tpu.core_type<tc>, window_params = [{transform_indices = @transform_0, window_bounds = array<i64: 16, 32>}, {transform_indices = @transform_1, window_bounds = array<i64: 32, 96>}, {transform_indices = @transform_2, window_bounds = array<i64: 1, 96>}, {transform_indices = @transform_3, window_bounds = array<i64: 16, 96>}]} {
    %c0_i32 = arith.constant 0 : i32
    %0 = arith.cmpi eq, %arg2, %c0_i32 : i32
    %1 = arith.extui %0 : i1 to i32
    %c0_i32_0 = arith.constant 0 : i32
    %2 = arith.cmpi ne, %1, %c0_i32_0 : i32
    scf.if %2 {
      %cst_10 = arith.constant 0.000000e+00 : f32
      %12 = vector.broadcast %cst_10 : f32 to vector<16x96xf32>
      %c0_11 = arith.constant 0 : index
      %c0_12 = arith.constant 0 : index
      %13 = vector.load %arg7[%c0_11, %c0_12] : memref<16x96xf32, #tpu.memory_space<vmem>>, vector<16x96xf32>
      tpu.vector_store %arg7[%c0_11, %c0_12], %12 {strides = array<i32>} : memref<16x96xf32, #tpu.memory_space<vmem>>, vector<16x96xf32>,
    } else {
    }
    %c0 = arith.constant 0 : index
    %c0_1 = arith.constant 0 : index
    %3 = vector.load %arg7[%c0, %c0_1] : memref<16x96xf32, #tpu.memory_space<vmem>>, vector<16x96xf32>
    %c0_2 = arith.constant 0 : index
    %c0_3 = arith.constant 0 : index
    %4 = vector.load %arg3[%c0_2, %c0_3] : memref<16x32xbf16, #tpu.memory_space<vmem>>, vector<16x32xbf16>
    %c0_4 = arith.constant 0 : index
    %c0_5 = arith.constant 0 : index
    %5 = vector.load %arg4[%c0_4, %c0_5] : memref<32x96xbf16, #tpu.memory_space<vmem>>, vector<32x96xbf16>
    %cst = arith.constant dense<0.000000e+00> : vector<16x96xf32>
    %6 = tpu.matmul %4, %5, %cst {dimension_numbers = #tpu.dot_dimension_numbers<[1], [0], [0], [1], [0, 0, 1, 1], [], []>} : vector<16x32xbf16>, vector<32x96xbf16>, vector<16x96xf32> -> vector<16x96xf32>
    %7 = arith.addf %3, %6 : vector<16x96xf32>
    %c0_6 = arith.constant 0 : index
    %c0_7 = arith.constant 0 : index
    %8 = vector.load %arg7[%c0_6, %c0_7] : memref<16x96xf32, #tpu.memory_space<vmem>>, vector<16x96xf32>
    tpu.vector_store %arg7[%c0_6, %c0_7], %7 {strides = array<i32>} : memref<16x96xf32, #tpu.memory_space<vmem>>, vector<16x96xf32>,
    %c0_i32_8 = arith.constant 0 : i32
    %9 = arith.cmpi eq, %arg2, %c0_i32_8 : i32
    %10 = arith.extui %9 : i1 to i32
    %c0_i32_9 = arith.constant 0 : i32
    %11 = arith.cmpi ne, %10, %c0_i32_9 : i32
    scf.if %11 {
      %c0_10 = arith.constant 0 : index
      %c0_11 = arith.constant 0 : index
      %12 = vector.load %arg7[%c0_10, %c0_11] : memref<16x96xf32, #tpu.memory_space<vmem>>, vector<16x96xf32>
      %c0_12 = arith.constant 0 : index
      %c0_13 = arith.constant 0 : index
      %13 = vector.load %arg5[%c0_12, %c0_13] : memref<1x96xf32, #tpu.memory_space<vmem>>, vector<1x96xf32>
      %14 = vector.broadcast %13 : vector<1x96xf32> to vector<16x96xf32>
      %15 = arith.addf %12, %14 : vector<16x96xf32>
      %16 = arith.truncf %15 : vector<16x96xf32> to vector<16x96xbf16>
      %c0_14 = arith.constant 0 : index
      %c0_15 = arith.constant 0 : index
      %17 = vector.load %arg6[%c0_14, %c0_15] : memref<16x96xbf16, #tpu.memory_space<vmem>>, vector<16x96xbf16>
      tpu.vector_store %arg6[%c0_14, %c0_15], %16 {strides = array<i32>} : memref<16x96xbf16, #tpu.memory_space<vmem>>, vector<16x96xbf16>,
    } else {
    }
    return
  }
  func.func @transform_0(%arg0: i32, %arg1: i32, %arg2: i32) -> (i32, i32) {
    %c0_i32 = arith.constant 0 : i32
    return %arg0, %arg2 : i32, i32
  }
  func.func @transform_1(%arg0: i32, %arg1: i32, %arg2: i32) -> (i32, i32) {
    %c0_i32 = arith.constant 0 : i32
    return %arg2, %arg1 : i32, i32
  }
  func.func @transform_2(%arg0: i32, %arg1: i32, %arg2: i32) -> (i32, i32) {
    %c0_i32 = arith.constant 0 : i32
    %c0_i32_0 = arith.constant 0 : i32
    return %c0_i32, %arg1 : i32, i32
  }
  func.func @transform_3(%arg0: i32, %arg1: i32, %arg2: i32) -> (i32, i32) {
    %c0_i32 = arith.constant 0 : i32
    return %arg0, %arg1 : i32, i32
  }
}

</mosaic_0001>

<llo_original>
// kernel: tpu_custom_call.1
$region0: #{tpu_custom_call.1}
  #allocation0 [shape = 'u32[]', space=smem, size = 0x4, offset = 0x4, fixed_abs, tag = 'smem constant byte address 0x4 - core index']
  #allocation1 [shape = 'u32[144,128]{1,0:T(1,128)}', space=vmem, size = 0x12000, scoped, tag = 'internal scratch']
  #allocation2 [shape = 'f32[16,96]{1,0:T(8,128)}', space=vmem, size = 0x2000, scoped, tag = 'scratch operand']
  %s0 = inlined_call_operand.hbm [shape: bf16[16,32], index: 0, kind: input, shape index: {}]
  %s1 = inlined_call_operand.hbm [shape: bf16[32,96], index: 1, kind: input, shape index: {}]
  %s2 = inlined_call_operand.vmem [shape: f32[1,96], index: 2, kind: input, shape index: {}]
  %s3 = inlined_call_operand.hbm [shape: bf16[16,96], index: 3, kind: output, shape index: {}]
  %s4 = sld [smem:[#allocation0]]
  $region38: #{tpu_custom_call.1} parent=0
    _
  %s6 = ssub.s32 1, %s4
  %s7 = scalar_select 0, %s6, %s4
  $region1: #{tpu_custom_call.1} parent=0
    #allocation3 [shape = 'u8[4096]{0}', space=vmem, size = 0x1000, scoped, tag = 'input window, operand 0, single buffered']
    #allocation4 [shape = 's32[1]{0}', space=sflag, size = 0x4, scoped, tag = 'scoped memory for tpu_custom_call.1']
    #allocation5 [shape = 's32[1]{0}', space=sflag, size = 0x4, scoped, tag = 'scoped memory for tpu_custom_call.1']
    #allocation6 [shape = 'u8[8192]{0}', space=vmem, size = 0x2000, scoped, tag = 'input window, operand 1, single buffered']
    #allocation7 [shape = 's32[1]{0}', space=sflag, size = 0x4, scoped, tag = 'scoped memory for tpu_custom_call.1']
    #allocation8 [shape = 'u8[4096]{0}', space=vmem, size = 0x1000, scoped, tag = 'output window, operand 0, single buffered']
    %8 = vsyncpa [#allocation4], 0
    %9 = vsyncpa [#allocation7], 0
    %10 = vsyncpa [#allocation5], 0
    // Predicated region
    $region2: #{tpu_custom_call.1} parent=1 // pred_check
      _
    $region3: #{tpu_custom_call.1} parent=1 // pred_check_branch
      %12 = sbr.rel (0) target = $region5
    $region4: #{tpu_custom_call.1} parent=1 // pred_region
      %s14 = ssub.s32 128, 128
      %15 = vsyncadd [#allocation4], %s14
      %s16 = sshll.u32 [#allocation3], 4
      %s17 = int_to_ptr.vmem [resolvable:$true] %s16
      %22 = dma.hbm_to_vmem [thread:$0]  %s0, 128, %s17, [#allocation4], 64, 64, 4
    $region5: #{tpu_custom_call.1} parent=1 // pred_fallthru
      _
    // Predicated region
    $region6: #{tpu_custom_call.1} parent=1 // pred_check
      _
    $region7: #{tpu_custom_call.1} parent=1 // pred_check_branch
      %24 = sbr.rel (0) target = $region9
    $region8: #{tpu_custom_call.1} parent=1 // pred_region
      %s26 = ssub.s32 256, 256
      %27 = vsyncadd [#allocation7], %s26
      %s28 = sshll.u32 [#allocation6], 4
      %s29 = int_to_ptr.vmem [resolvable:$true] %s28
      %34 = dma.hbm_to_vmem [thread:$0]  %s1, 256, %s29, [#allocation7], 64, 64, 4
    $region9: #{tpu_custom_call.1} parent=1 // pred_fallthru
      _
    // Predicated region
    $region10: #{tpu_custom_call.1} parent=1 // pred_check
      _
    $region11: #{tpu_custom_call.1} parent=1 // pred_check_branch
      %36 = sbr.rel (0) target = $region13
    $region12: #{tpu_custom_call.1} parent=1 // pred_region
      _
    $region13: #{tpu_custom_call.1} parent=1 // pred_fallthru
      _
    // Predicated region
    $region14: #{tpu_custom_call.1} parent=1 // pred_check
      _
    $region15: #{tpu_custom_call.1} parent=1 // pred_check_branch
      %38 = sbr.rel (0) target = $region17
    $region16: #{tpu_custom_call.1} parent=1 // pred_region
      %39 = dma.done [#allocation4], 128
    $region17: #{tpu_custom_call.1} parent=1 // pred_fallthru
      _
    // Predicated region
    $region18: #{tpu_custom_call.1} parent=1 // pred_check
      _
    $region19: #{tpu_custom_call.1} parent=1 // pred_check_branch
      %41 = sbr.rel (0) target = $region21
    $region20: #{tpu_custom_call.1} parent=1 // pred_region
      %42 = dma.done [#allocation7], 256
    $region21: #{tpu_custom_call.1} parent=1 // pred_fallthru
      _
    %p44 = scmp.eq.s32.totalorder 0, 0
    // Predicated region
    $region22: #{tpu_custom_call.1} parent=1 // pred_check
      %p45 = pneg %p44
    $region23: #{tpu_custom_call.1} parent=1 // pred_check_branch
      %47 = sbr.rel (%p45) target = $region25
    $region24: #{tpu_custom_call.1} parent=1 // pred_region
      %vm48 = vcmask 785408
      %49 = vst.msk [vmem:[#allocation2] sm:$0xff] %vm48, 0.0
      %50 = vst.msk [vmem:[#allocation2 + $0x8] sm:$0xff] %vm48, 0.0
    $region25: #{tpu_custom_call.1} parent=1 // pred_fallthru
      _
    %v51 = vld [vmem:[#allocation2] sm:$0xff]
    %v52 = vld [vmem:[#allocation2 + $0x8] sm:$0xff]
    %v53 = vld [vmem:[#allocation3] sm:$0xf]
    %v54 = vld [vmem:[#allocation3 + $0x4] sm:$0xf]
    %v55 = vld [vmem:[#allocation6] sm:$0xf]
    %v56 = vld [vmem:[#allocation6 + $0x4] sm:$0xf]
    %v57 = vld [vmem:[#allocation6 + $0x8] sm:$0xf]
    %v58 = vld [vmem:[#allocation6 + $0xc] sm:$0xf]
    %v61 = vunpack.c.l.b16 %v53
    %v62 = vunpack.c.l.b16 %v54
    %v63 = vpack.c.b16 %v62, %v61
    %v68 = vunpack.c.l.b16 %v55
    %v69 = vunpack.c.l.b16 %v56
    %v70 = vunpack.c.l.b16 %v57
    %v71 = vunpack.c.l.b16 %v58
    %v72 = vpack.c.b16 %v69, %v68
    %v73 = vpack.c.b16 %v71, %v70
    %vm76 = vcmask 261120
    %v78 = vsel %vm76, %v63, 0
    %80 = vmatprep.subr.bf16.mxu0 0
    %81 = vmatpush1.bf16.msra.mxu0 %v72
    %82 = vmatprep.subr.bf16.mxu0 0
    %83 = vmatpush1.bf16.msra.mxu0 %v73
    %84 = vmatprep.subr.bf16.mxu0 0
    %85 = vmatpush1.bf16.msra.mxu0 0
    %86 = vmatprep.subr.bf16.mxu0 0
    %87 = vmatpush1.bf16.msra.mxu0 0
    %88 = vmatprep.subr.bf16.mxu0 0
    %89 = vmatpush1.bf16.msra.mxu0 0
    %90 = vmatprep.subr.bf16.mxu0 0
    %91 = vmatpush1.bf16.msra.mxu0 0
    %92 = vmatprep.subr.bf16.mxu0 0
    %93 = vmatpush1.bf16.msra.mxu0 0
    %94 = vmatprep.subr.bf16.mxu0 0
    %95 = vmatpush1.bf16.msra.mxu0 0
    %96 = vmatprep.subr.bf16.mxu0 0
    %97 = vmatpush1.bf16.msra.mxu0 0
    %98 = vmatprep.subr.bf16.mxu0 0
    %99 = vmatpush1.bf16.msra.mxu0 0
    %100 = vmatprep.subr.bf16.mxu0 0
    %101 = vmatpush1.bf16.msra.mxu0 0
    %102 = vmatprep.subr.bf16.mxu0 0
    %103 = vmatpush1.bf16.msra.mxu0 0
    %104 = vmatprep.subr.bf16.mxu0 0
    %105 = vmatpush1.bf16.msra.mxu0 0
    %106 = vmatprep.subr.bf16.mxu0 0
    %107 = vmatpush1.bf16.msra.mxu0 0
    %108 = vmatprep.subr.bf16.mxu0 0
    %109 = vmatpush1.bf16.msra.mxu0 0
    %110 = vmatprep.subr.bf16.mxu0 0
    %111 = vmatpush1.bf16.msra.mxu0 0
    %112 = vmatprep.mubr.bf16.mxu0 0
    %113 = vmatmul.mubr.bf16.gmra.mrb[0].mxu0 %v78
    %v114 = vpop.f32.mrb[0].mxu0
    %v115 = vadd.f32 0.0, %v114
    %v116 = vpop.f32.mrb[0].mxu0
    %v117 = vpop.f32.mrb[0].mxu0
    %v118 = vadd.f32 0.0, %v117
    %v119 = vpop.f32.mrb[0].mxu0
    %120 = vdwg.mxu0
    %v121 = vadd.f32 %v51, %v115
    %v122 = vadd.f32 %v52, %v118
    %vm123 = vcmask 785408
    %124 = vst.msk [vmem:[#allocation2] sm:$0xff] %vm123, %v121
    %125 = vst.msk [vmem:[#allocation2 + $0x8] sm:$0xff] %vm123, %v122
    // Predicated region
    $region26: #{tpu_custom_call.1} parent=1 // pred_check
      %p126 = pneg %p44
    $region27: #{tpu_custom_call.1} parent=1 // pred_check_branch
      %128 = sbr.rel (%p126) target = $region29
    $region28: #{tpu_custom_call.1} parent=1 // pred_region
      %v129 = vld [vmem:[#allocation2] sm:$0xff]
      %v130 = vld [vmem:[#allocation2 + $0x8] sm:$0xff]
      %v131 = vld [vmem:[%s2] sm:$0x1]
      %v133 = vlaneseq
      %v134 = vshrl.u32 %v133, 7
      %v135 = vsub.s32 0, %v134
      %v136 = vrot.slane %v131, %v135
      %v138 = vadd.f32 %v129, %v136
      %v139 = vadd.f32 %v130, %v136
      %v140 = vpack.c.bf16 %v139, %v138
      %v142 = vunpack.c.l.b16 %v140
      %v143 = vunpack.c.h.b16 %v140
      %v144 = vpack.c.b16 %v142, %v142
      %v145 = vpack.c.b16 %v143, %v143
      %vm148 = vcmask 781312
      %149 = vst.msk [vmem:[#allocation8] sm:$0xf] %vm148, %v144
      %150 = vst.msk [vmem:[#allocation8 + $0x4] sm:$0xf] %vm148, %v145
    $region29: #{tpu_custom_call.1} parent=1 // pred_fallthru
      _
    // Predicated region
    $region30: #{tpu_custom_call.1} parent=1 // pred_check
      _
    $region31: #{tpu_custom_call.1} parent=1 // pred_check_branch
      %152 = sbr.rel (0) target = $region33
    $region32: #{tpu_custom_call.1} parent=1 // pred_region
      %s154 = ssub.s32 128, 128
      %155 = vsyncadd [#allocation5], %s154
      %s156 = sshll.u32 [#allocation8], 4
      %s157 = int_to_ptr.vmem [resolvable:$true] %s156
      %162 = dma.vmem_to_hbm [thread:$0]  %s157, 128, %s3, [#allocation5], 64, 64, 4
    $region33: #{tpu_custom_call.1} parent=1 // pred_fallthru
      _
    // Predicated region
    $region34: #{tpu_custom_call.1} parent=1 // pred_check
      _
    $region35: #{tpu_custom_call.1} parent=1 // pred_check_branch
      %164 = sbr.rel (0) target = $region37
    $region36: #{tpu_custom_call.1} parent=1 // pred_region
      %165 = dma.done [#allocation5], 128
    $region37: #{tpu_custom_call.1} parent=1 // pred_fallthru
      _
    %166 = vsyncpa [#allocation4], 1
    %167 = vsyncpa [#allocation7], 1
    %168 = vsyncpa [#allocation5], 1

</llo_original>
